<compile_context>
chip_gen: v6e
topology: v6e:2x2x1
jax: 0.10.0
libtpu: 0.0.40
codegen_flags: <defaults>
</compile_context>

<pallas_src>
import jax
import jax.numpy as jnp
from jax.experimental import pallas as pl
from jax.experimental.pallas import tpu as pltpu


HIDDEN_SIZE = 128
_ROW_ALIGN = 16   # bf16 sublane tile is (16, 128); keep every slab segment tile-aligned.


def _round_up(x, m):
    return (x + m - 1) // m * m


# ---------------------------------------------------------------------------
# Kernel factory
# ---------------------------------------------------------------------------
def _make_dqn_kernel(n_pad, hidden, k_actions, offs, *, want_q, want_action):
    """Fused MLP (+ optional greedy argmax) with static slab offsets baked in."""
    o_w1, o_b1, o_w2, o_b2, o_w3, o_b3 = offs

    def kernel(x_ref, p_ref, *out_refs):
        x = x_ref[...].astype(jnp.bfloat16)                 # (Bt, n_pad) f32 -> bf16
        # Static, tile-aligned sub-views of the packed bf16 parameter slab.
        w1 = p_ref[o_w1:o_w1 + n_pad, :]                    # (n_pad, H) bf16
        b1 = p_ref[o_b1:o_b1 + 1, :].astype(jnp.float32)    # (1, H)
        w2 = p_ref[o_w2:o_w2 + hidden, :]                   # (H, H) bf16
        b2 = p_ref[o_b2:o_b2 + 1, :].astype(jnp.float32)
        w3 = p_ref[o_w3:o_w3 + hidden, :]                   # (H, H) bf16, cols >= k_actions are 0
        b3 = p_ref[o_b3:o_b3 + 1, :].astype(jnp.float32)

        h1 = jnp.maximum(jnp.dot(x, w1, preferred_element_type=jnp.float32) + b1, 0.0)
        h2 = jnp.maximum(
            jnp.dot(h1.astype(jnp.bfloat16), w2, preferred_element_type=jnp.float32) + b2, 0.0)
        q = jnp.dot(h2.astype(jnp.bfloat16), w3, preferred_element_type=jnp.float32) + b3

        idx = 0
        if want_q:
            out_refs[idx][...] = q                          # lane-dense (Bt, 128) store
            idx += 1
        if want_action:
            # Fused greedy policy: argmax over the first k_actions columns.
            # Padded columns are masked to -inf so a 0.0 pad can never win.
            # NaN-unsafe by design (documented assumption).
            col = jax.lax.broadcasted_iota(jnp.int32, q.shape, 1)
            valid = col < k_actions
            qv = jnp.where(valid, q, -jnp.inf)
            qmax = jnp.max(qv, axis=-1, keepdims=True)
            hit = jnp.where(valid & (qv >= qmax), col, jnp.int32(hidden))
            out_refs[idx][...] = jnp.min(hit, axis=-1, keepdims=True)   # first max index

    return kernel


# ---------------------------------------------------------------------------
# Parameter init / packing
# ---------------------------------------------------------------------------
def init_dqn_params(key, k_actions, n_states, hidden_size=HIDDEN_SIZE):
    """nn.Linear-style init, weights stored transposed as (in_features, out_features)."""
    def linear(key, fan_in, fan_out):
        kw, kb = jax.random.split(key)
        bound = 1.0 / (fan_in ** 0.5)
        w = jax.random.uniform(kw, (fan_in, fan_out), jnp.float32, -bound, bound)
        b = jax.random.uniform(kb, (1, fan_out), jnp.float32, -bound, bound)
        return w, b

    k1, k2, k3 = jax.random.split(key, 3)
    w1, b1 = linear(k1, n_states, hidden_size)
    w2, b2 = linear(k2, hidden_size, hidden_size)
    w3, b3 = linear(k3, hidden_size, k_actions)
    return (w1, b1, w2, b2, w3, b3)


def pack_dqn_params(params, dtype=jnp.bfloat16):
    """Pack all weights/biases into a single (rows, hidden) bf16 slab.

    Segments (row counts padded to 16-row boundaries, columns padded to `hidden`):
      [W1 (n_pad,H) | b1 (16,H) | W2 (H,H) | b2 (16,H) | W3_pad (H,H) | b3_pad (16,H)]
    W3/b3 are zero-padded in the column (k_actions -> hidden) dimension so the last
    matmul + store stay lane-dense.
    """
    w1, b1, w2, b2, w3, b3 = params
    n_states, hidden = w1.shape
    k_actions = w3.shape[1]
    assert hidden % 128 == 0, "hidden size must be a multiple of 128"
    assert k_actions <= hidden
    n_pad = _round_up(n_states, _ROW_ALIGN)

    def pad_to(a, rows, cols):
        a = a.astype(jnp.float32)
        a = jnp.pad(a, ((0, rows - a.shape[0]), (0, cols - a.shape[1])))
        return a.astype(dtype)

    segs = [
        pad_to(w1, n_pad, hidden),
        pad_to(b1.reshape(1, -1), _ROW_ALIGN, hidden),
        pad_to(w2, hidden, hidden),
        pad_to(b2.reshape(1, -1), _ROW_ALIGN, hidden),
        pad_to(w3, hidden, hidden),
        pad_to(b3.reshape(1, -1), _ROW_ALIGN, hidden),
    ]
    offsets, row = [], 0
    for s in segs:
        offsets.append(row)
        row += s.shape[0]
    packed = jnp.concatenate(segs, axis=0)
    meta = dict(n_states=n_states, n_pad=n_pad, hidden=hidden, k_actions=k_actions,
                offsets=tuple(offsets), rows=row)
    return packed, meta


def _prep_state(state, n_states, n_pad):
    """Flatten like state.view(B, -1), zero-pad features and batch to hardware tiles."""
    batch = state.shape[0]
    x = state.reshape(batch, -1).astype(jnp.float32)
    assert x.shape[1] == n_states
    if n_pad != n_states:
        x = jnp.pad(x, ((0, 0), (0, n_pad - n_states)))
    b_pad = _round_up(max(batch, 8), 8)
    if b_pad != batch:
        x = jnp.pad(x, ((0, b_pad - batch), (0, 0)))
    return x, batch, b_pad


# ---------------------------------------------------------------------------
# Forward wrappers
# ---------------------------------------------------------------------------
def dqn_forward(state, packed, meta, *, batch_tile=512, want_action=False):
    """DQNAgent.forward: Q-values (B, k_actions); optionally also the greedy action.

    Batch axis is tiled on a 'parallel' grid; the bf16 parameter slab uses a constant
    index_map so it is DMA'd once and stays VMEM-resident across batch tiles.
    batch_tile=512 fits comfortably in VMEM with double-buffering on v5e/v6e/v7x
    (hidden=128 f32 activations).
    """
    n_pad, hidden = meta["n_pad"], meta["hidden"]
    k_actions, rows = meta["k_actions"], meta["rows"]
    x, batch, b_pad = _prep_state(state, meta["n_states"], n_pad)

    bt = min(batch_tile, b_pad)
    b_full = _round_up(b_pad, bt)
    if b_full != b_pad:
        x = jnp.pad(x, ((0, b_full - b_pad), (0, 0)))
        b_pad = b_full
    n_tiles = b_pad // bt

    kernel = _make_dqn_kernel(n_pad, hidden, k_actions, meta["offsets"],
                              want_q=True, want_action=want_action)

    out_shape = [jax.ShapeDtypeStruct((b_pad, hidden), jnp.float32)]
    out_specs = [pl.BlockSpec((bt, hidden), lambda i: (i, 0))]
    if want_action:
        out_shape.append(jax.ShapeDtypeStruct((b_pad, 1), jnp.int32))
        out_specs.append(pl.BlockSpec((bt, 1), lambda i: (i, 0)))

    flops = 2 * b_pad * hidden * (n_pad + 2 * hidden)
    bytes_accessed = (4 * x.size + packed.dtype.itemsize * packed.size
                      + 4 * b_pad * hidden + (4 * b_pad if want_action else 0))

    outs = pl.pallas_call(
        kernel,
        grid=(n_tiles,),
        in_specs=[pl.BlockSpec((bt, n_pad), lambda i: (i, 0)),
                  pl.BlockSpec((rows, hidden), lambda i: (0, 0))],   # slab: DMA once, stays resident
        out_specs=tuple(out_specs),
        out_shape=tuple(out_shape),
        compiler_params=pltpu.CompilerParams(dimension_semantics=("parallel",)),
        cost_estimate=pl.CostEstimate(flops=flops, transcendentals=0,
                                      bytes_accessed=bytes_accessed),
    )(x, packed)

    q = outs[0][:batch, :k_actions]
    if want_action:
        return q, outs[1][:batch, 0]
    return q


def dqn_greedy_action(state, packed, meta):
    """Acting-path forward: greedy action only (no q store, no wrapper slice)."""
    n_pad, hidden = meta["n_pad"], meta["hidden"]
    k_actions, rows = meta["k_actions"], meta["rows"]
    x, batch, b_pad = _prep_state(state, meta["n_states"], n_pad)

    kernel = _make_dqn_kernel(n_pad, hidden, k_actions, meta["offsets"],
                              want_q=False, want_action=True)

    flops = 2 * b_pad * hidden * (n_pad + 2 * hidden)
    bytes_accessed = 4 * x.size + packed.dtype.itemsize * packed.size + 4 * b_pad

    vmem = pl.BlockSpec(memory_space=pltpu.MemorySpace.VMEM)
    action = pl.pallas_call(
        kernel,
        out_shape=jax.ShapeDtypeStruct((b_pad, 1), jnp.int32),
        in_specs=[vmem, vmem],
        out_specs=vmem,
        cost_estimate=pl.CostEstimate(flops=flops, transcendentals=0,
                                      bytes_accessed=bytes_accessed),
    )(x, packed)
    return action[:batch, 0]


def dqn_forward_dual(states, packed_stack, meta, *, want_action=False):
    """Fused policy+target forward in ONE launch.

    states:       (2, B, ...)   -- e.g. (states, next_states)
    packed_stack: (2, rows, H)  -- stacked bf16 slabs (policy, target)
    grid=(2,) selects the per-network slab / batch via index_map; the axis is
    'parallel' so v7x's two TensorCores each run one network.
    """
    n_pad, hidden = meta["n_pad"], meta["hidden"]
    k_actions, rows = meta["k_actions"], meta["rows"]
    n_nets, batch = states.shape[0], states.shape[1]
    assert packed_stack.shape[0] == n_nets

    x = states.reshape(n_nets, batch, -1).astype(jnp.float32)
    assert x.shape[-1] == meta["n_states"]
    if n_pad != meta["n_states"]:
        x = jnp.pad(x, ((0, 0), (0, 0), (0, n_pad - meta["n_states"])))
    b_pad = _round_up(max(batch, 8), 8)
    if b_pad != batch:
        x = jnp.pad(x, ((0, 0), (0, b_pad - batch), (0, 0)))

    kernel = _make_dqn_kernel(n_pad, hidden, k_actions, meta["offsets"],
                              want_q=True, want_action=want_action)

    out_shape = [jax.ShapeDtypeStruct((n_nets, b_pad, hidden), jnp.float32)]
    out_specs = [pl.BlockSpec((None, b_pad, hidden), lambda g: (g, 0, 0))]
    if want_action:
        out_shape.append(jax.ShapeDtypeStruct((n_nets, b_pad, 1), jnp.int32))
        out_specs.append(pl.BlockSpec((None, b_pad, 1), lambda g: (g, 0, 0)))

    flops = 2 * n_nets * b_pad * hidden * (n_pad + 2 * hidden)
    bytes_accessed = (4 * x.size + packed_stack.dtype.itemsize * packed_stack.size
                      + 4 * n_nets * b_pad * hidden)

    outs = pl.pallas_call(
        kernel,
        grid=(n_nets,),
        in_specs=[pl.BlockSpec((None, b_pad, n_pad), lambda g: (g, 0, 0)),
                  pl.BlockSpec((None, rows, hidden), lambda g: (g, 0, 0))],
        out_specs=tuple(out_specs),
        out_shape=tuple(out_shape),
        compiler_params=pltpu.CompilerParams(dimension_semantics=("parallel",)),
        cost_estimate=pl.CostEstimate(flops=flops, transcendentals=0,
                                      bytes_accessed=bytes_accessed),
    )(x, packed_stack)

    q = outs[0][:, :batch, :k_actions]
    if want_action:
        return q, outs[1][:, :batch, 0]
    return q


# ---------------------------------------------------------------------------
# Plain-JAX reference (emulates the kernel's bf16-weight / f32-accumulate math)
# ---------------------------------------------------------------------------
def dqn_forward_ref(state, params):
    w1, b1, w2, b2, w3, b3 = params
    x = state.reshape(state.shape[0], -1).astype(jnp.float32)

    def lin(a, w, b):
        y = jnp.dot(a.astype(jnp.bfloat16), w.astype(jnp.bfloat16),
                    preferred_element_type=jnp.float32)
        return y + b.astype(jnp.bfloat16).astype(jnp.float32)

    h1 = jnp.maximum(lin(x, w1, b1), 0.0)
    h2 = jnp.maximum(lin(h1, w2, b2), 0.0)
    return lin(h2, w3, b3)


if __name__ == "__main__":
    # Grid-world style setup: 4x4 grid -> n_states = 16, k_actions = 4.
    key = jax.random.PRNGKey(0)
    k_policy, k_target, k_state, k_next = jax.random.split(key, 4)

    k_actions = 4
    grid_h, grid_w = 4, 4
    n_states = grid_h * grid_w
    batch = 8

    policy_params = init_dqn_params(k_policy, k_actions, n_states, HIDDEN_SIZE)
    target_params = init_dqn_params(k_target, k_actions, n_states, HIDDEN_SIZE)
    policy_slab, meta = pack_dqn_params(policy_params)
    target_slab, _ = pack_dqn_params(target_params)

    # State arrives as (B, 4, 4); forward flattens it like state.view(B, -1).
    state = jax.random.uniform(k_state, (batch, grid_h, grid_w), jnp.float32)
    next_state = jax.random.uniform(k_next, (batch, grid_h, grid_w), jnp.float32)

    # 1) Module forward semantics (Q-values) + fused greedy action.
    q, action = dqn_forward(state, policy_slab, meta, want_action=True)
    q = jax.block_until_ready(q)
    action = jax.block_until_ready(action)

    q_ref = dqn_forward_ref(state, policy_params)
    a_ref = jnp.argmax(q_ref, axis=-1).astype(jnp.int32)
    assert q.shape == (batch, k_actions)
    assert action.shape == (batch,)
    assert jnp.allclose(q, q_ref, atol=2e-3, rtol=2e-3), "Q mismatch vs JAX reference"
    assert jnp.array_equal(action, a_ref), "greedy action mismatch vs JAX reference"

    # 2) Acting hot path: action-only (skips the q store and wrapper slice).
    a_only = jax.block_until_ready(dqn_greedy_action(state[:1], policy_slab, meta))
    assert a_only.shape == (1,)
    assert int(a_only[0]) == int(a_ref[0]), "action-only path mismatch"

    # 3) Fused policy(states) + target(next_states) forwards in ONE launch.
    q_dual = dqn_forward_dual(jnp.stack([state, next_state]),
                              jnp.stack([policy_slab, target_slab]), meta)
    q_dual = jax.block_until_ready(q_dual)
    q_tgt_ref = dqn_forward_ref(next_state, target_params)
    assert q_dual.shape == (2, batch, k_actions)
    assert jnp.allclose(q_dual[0], q_ref, atol=2e-3, rtol=2e-3), "dual policy Q mismatch"
    assert jnp.allclose(q_dual[1], q_tgt_ref, atol=2e-3, rtol=2e-3), "dual target Q mismatch"

    # TODO(synk): eps-greedy random-action branch of `policy()` is host-side control
    # flow / RNG, not part of the forward hot path; left outside the kernel.
    # TODO(synk): optimizer step / target-network deepcopy sync are training-loop glue,
    # not kernel work.

    print("KERNEL_OK")
</pallas_src>

<mosaic_0001>
module attributes {stable_mosaic.version = 11 : i64} {
  func.func @kernel(%arg0: i32, %arg1: memref<8x16xf32, #tpu.memory_space<vmem>>, %arg2: memref<320x128xbf16, #tpu.memory_space<vmem>>, %arg3: memref<8x128xf32, #tpu.memory_space<vmem>>, %arg4: memref<8x1xi32, #tpu.memory_space<vmem>>) attributes {dimension_semantics = [#tpu.dimension_semantics<parallel>], iteration_bounds = array<i64: 1>, scalar_prefetch = 0 : i64, scratch_operands = 0 : i64, tpu.core_type = #tpu.core_type<tc>, window_params = [{transform_indices = @transform_0, window_bounds = array<i64: 8, 16>}, {pipeline_mode = #tpu.pipeline_mode<synchronous>, transform_indices = @transform_1, window_bounds = array<i64: 320, 128>}, {transform_indices = @transform_2, window_bounds = array<i64: 8, 128>}, {transform_indices = @transform_3, window_bounds = array<i64: 8, 1>}]} {
    %c0 = arith.constant 0 : index
    %c0_0 = arith.constant 0 : index
    %0 = vector.load %arg1[%c0, %c0_0] : memref<8x16xf32, #tpu.memory_space<vmem>>, vector<8x16xf32>
    %1 = arith.truncf %0 : vector<8x16xf32> to vector<8x16xbf16>
    %c0_1 = arith.constant 0 : index
    %c0_2 = arith.constant 0 : index
    %2 = vector.load %arg2[%c0_1, %c0_2] : memref<320x128xbf16, #tpu.memory_space<vmem>>, vector<16x128xbf16>
    %c16 = arith.constant 16 : index
    %c0_3 = arith.constant 0 : index
    %3 = vector.load %arg2[%c16, %c0_3] : memref<320x128xbf16, #tpu.memory_space<vmem>>, vector<1x128xbf16>
    %4 = arith.extf %3 : vector<1x128xbf16> to vector<1x128xf32>
    %c32 = arith.constant 32 : index
    %c0_4 = arith.constant 0 : index
    %5 = vector.load %arg2[%c32, %c0_4] : memref<320x128xbf16, #tpu.memory_space<vmem>>, vector<128x128xbf16>
    %c160 = arith.constant 160 : index
    %c0_5 = arith.constant 0 : index
    %6 = vector.load %arg2[%c160, %c0_5] : memref<320x128xbf16, #tpu.memory_space<vmem>>, vector<1x128xbf16>
    %7 = arith.extf %6 : vector<1x128xbf16> to vector<1x128xf32>
    %c176 = arith.constant 176 : index
    %c0_6 = arith.constant 0 : index
    %8 = vector.load %arg2[%c176, %c0_6] : memref<320x128xbf16, #tpu.memory_space<vmem>>, vector<128x128xbf16>
    %c304 = arith.constant 304 : index
    %c0_7 = arith.constant 0 : index
    %9 = vector.load %arg2[%c304, %c0_7] : memref<320x128xbf16, #tpu.memory_space<vmem>>, vector<1x128xbf16>
    %10 = arith.extf %9 : vector<1x128xbf16> to vector<1x128xf32>
    %cst = arith.constant dense<0.000000e+00> : vector<8x128xf32>
    %11 = tpu.matmul %1, %2, %cst {dimension_numbers = #tpu.dot_dimension_numbers<[1], [0], [0], [1], [0, 0, 1, 1], [], []>} : vector<8x16xbf16>, vector<16x128xbf16>, vector<8x128xf32> -> vector<8x128xf32>
    %12 = vector.broadcast %4 : vector<1x128xf32> to vector<8x128xf32>
    %13 = arith.addf %11, %12 : vector<8x128xf32>
    %cst_8 = arith.constant 0.000000e+00 : f32
    %14 = vector.broadcast %cst_8 : f32 to vector<8x128xf32>
    %15 = arith.maximumf %13, %14 : vector<8x128xf32>
    %16 = arith.truncf %15 : vector<8x128xf32> to vector<8x128xbf16>
    %cst_9 = arith.constant dense<0.000000e+00> : vector<8x128xf32>
    %17 = tpu.matmul %16, %5, %cst_9 {dimension_numbers = #tpu.dot_dimension_numbers<[1], [0], [0], [1], [0, 0, 1, 1], [], []>} : vector<8x128xbf16>, vector<128x128xbf16>, vector<8x128xf32> -> vector<8x128xf32>
    %18 = vector.broadcast %7 : vector<1x128xf32> to vector<8x128xf32>
    %19 = arith.addf %17, %18 : vector<8x128xf32>
    %cst_10 = arith.constant 0.000000e+00 : f32
    %20 = vector.broadcast %cst_10 : f32 to vector<8x128xf32>
    %21 = arith.maximumf %19, %20 : vector<8x128xf32>
    %22 = arith.truncf %21 : vector<8x128xf32> to vector<8x128xbf16>
    %cst_11 = arith.constant dense<0.000000e+00> : vector<8x128xf32>
    %23 = tpu.matmul %22, %8, %cst_11 {dimension_numbers = #tpu.dot_dimension_numbers<[1], [0], [0], [1], [0, 0, 1, 1], [], []>} : vector<8x128xbf16>, vector<128x128xbf16>, vector<8x128xf32> -> vector<8x128xf32>
    %24 = vector.broadcast %10 : vector<1x128xf32> to vector<8x128xf32>
    %25 = arith.addf %23, %24 : vector<8x128xf32>
    %c0_12 = arith.constant 0 : index
    %c0_13 = arith.constant 0 : index
    %26 = vector.load %arg3[%c0_12, %c0_13] : memref<8x128xf32, #tpu.memory_space<vmem>>, vector<8x128xf32>
    tpu.vector_store %arg3[%c0_12, %c0_13], %25 {strides = array<i32>} : memref<8x128xf32, #tpu.memory_space<vmem>>, vector<8x128xf32>,
    %27 = tpu.iota {dimensions = array<i32: 1>} : vector<8x128xi32>
    %c4_i32 = arith.constant 4 : i32
    %28 = vector.broadcast %c4_i32 : i32 to vector<8x128xi32>
    %29 = arith.cmpi slt, %27, %28 : vector<8x128xi32>
    %cst_14 = arith.constant 0xFF800000 : f32
    %30 = vector.broadcast %cst_14 : f32 to vector<8x128xf32>
    %31 = arith.select %29, %25, %30 : vector<8x128xi1>, vector<8x128xf32>
    %cst_15 = arith.constant dense<0xFF800000> : vector<8xf32>
    %32 = vector.multi_reduction <maximumf>, %31, %cst_15 [1] : vector<8x128xf32> to vector<8xf32>
    %33 = vector.shape_cast %32 : vector<8xf32> to vector<8x1xf32>
    %34 = vector.broadcast %33 : vector<8x1xf32> to vector<8x128xf32>
    %35 = arith.cmpf oge, %31, %34 : vector<8x128xf32>
    %36 = arith.andi %29, %35 : vector<8x128xi1>
    %c128_i32 = arith.constant 128 : i32
    %37 = vector.broadcast %c128_i32 : i32 to vector<8x128xi32>
    %38 = arith.select %36, %27, %37 : vector<8x128xi1>, vector<8x128xi32>
    %cst_16 = arith.constant dense<2147483647> : vector<8xi32>
    %39 = vector.multi_reduction <minsi>, %38, %cst_16 [1] : vector<8x128xi32> to vector<8xi32>
    %40 = vector.shape_cast %39 : vector<8xi32> to vector<8x1xi32>
    %c0_17 = arith.constant 0 : index
    %c0_18 = arith.constant 0 : index
    %41 = vector.load %arg4[%c0_17, %c0_18] : memref<8x1xi32, #tpu.memory_space<vmem>>, vector<8x1xi32>
    tpu.vector_store %arg4[%c0_17, %c0_18], %40 {strides = array<i32>} : memref<8x1xi32, #tpu.memory_space<vmem>>, vector<8x1xi32>,
    return
  }
  func.func @transform_0(%arg0: i32) -> (i32, i32) {
    %c0_i32 = arith.constant 0 : i32
    %c0_i32_0 = arith.constant 0 : i32
    return %arg0, %c0_i32 : i32, i32
  }
  func.func @transform_1(%arg0: i32) -> (i32, i32) {
    %c0_i32 = arith.constant 0 : i32
    %c0_i32_0 = arith.constant 0 : i32
    %c0_i32_1 = arith.constant 0 : i32
    return %c0_i32, %c0_i32_0 : i32, i32
  }
  func.func @transform_2(%arg0: i32) -> (i32, i32) {
    %c0_i32 = arith.constant 0 : i32
    %c0_i32_0 = arith.constant 0 : i32
    return %arg0, %c0_i32 : i32, i32
  }
  func.func @transform_3(%arg0: i32) -> (i32, i32) {
    %c0_i32 = arith.constant 0 : i32
    %c0_i32_0 = arith.constant 0 : i32
    return %arg0, %c0_i32 : i32, i32
  }
}

</mosaic_0001>

<llo_original>
// kernel: tpu_custom_call.1
$region0: #{tpu_custom_call.1}
  #allocation0 [shape = 'u32[]', space=smem, size = 0x4, offset = 0x4, fixed_abs, tag = 'smem constant byte address 0x4 - core index']
  #allocation1 [shape = 'u32[144,128]{1,0:T(1,128)}', space=vmem, size = 0x12000, scoped, tag = 'internal scratch']
  %s0 = inlined_call_operand.hbm [shape: f32[8,16], index: 0, kind: input, shape index: {}]
  %s1 = inlined_call_operand.hbm [shape: bf16[320,128], index: 1, kind: input, shape index: {}]
  %s2 = inlined_call_operand.hbm [shape: f32[8,128], index: 2, kind: output, shape index: {0}]
  %s3 = inlined_call_operand.vmem [shape: s32[8,1], index: 3, kind: output, shape index: {1}]
  %4 = xla_tuple %s2, %s3
  %s5 = sld [smem:[#allocation0]]
  $region34: #{tpu_custom_call.1} parent=0
    _
  %s7 = ssub.s32 1, %s5
  %s8 = scalar_select 0, %s7, %s5
  $region1: #{tpu_custom_call.1} parent=0
    #allocation2 [shape = 'u8[4096]{0}', space=vmem, size = 0x1000, scoped, tag = 'input window, operand 0, single buffered']
    #allocation3 [shape = 's32[1]{0}', space=sflag, size = 0x4, scoped, tag = 'scoped memory for tpu_custom_call.1']
    #allocation4 [shape = 's32[1]{0}', space=sflag, size = 0x4, scoped, tag = 'scoped memory for tpu_custom_call.1']
    #allocation5 [shape = 'u8[81920]{0}', space=vmem, size = 0x14000, scoped, tag = 'input window, operand 1, single buffered']
    #allocation6 [shape = 's32[1]{0}', space=sflag, size = 0x4, scoped, tag = 'scoped memory for tpu_custom_call.1']
    #allocation7 [shape = 'u8[4096]{0}', space=vmem, size = 0x1000, scoped, tag = 'output window, operand 0, single buffered']
    %9 = vsyncpa [#allocation3], 0
    %10 = vsyncpa [#allocation6], 0
    %11 = vsyncpa [#allocation4], 0
    // Predicated region
    $region2: #{tpu_custom_call.1} parent=1 // pred_check
      _
    $region3: #{tpu_custom_call.1} parent=1 // pred_check_branch
      %13 = sbr.rel (0) target = $region5
    $region4: #{tpu_custom_call.1} parent=1 // pred_region
      %s15 = ssub.s32 128, 128
      %16 = vsyncadd [#allocation3], %s15
      %s18 = sshll.u32 [#allocation2], 4
      %s19 = int_to_ptr.vmem [resolvable:$true] %s18
      %21 = dma.hbm_to_vmem [thread:$0]  %s0, 128, %s19, [#allocation3]
    $region5: #{tpu_custom_call.1} parent=1 // pred_fallthru
      _
    // Predicated region
    $region6: #{tpu_custom_call.1} parent=1 // pred_check
      _
    $region7: #{tpu_custom_call.1} parent=1 // pred_check_branch
      %23 = sbr.rel (0) target = $region9
    $region8: #{tpu_custom_call.1} parent=1 // pred_region
      %s25 = ssub.s32 2560, 2560
      %26 = vsyncadd [#allocation6], %s25
      %s27 = sshll.u32 [#allocation5], 4
      %s28 = int_to_ptr.vmem [resolvable:$true] %s27
      %33 = dma.hbm_to_vmem [thread:$0]  %s1, 2560, %s28, [#allocation6], 64, 64, 4
    $region9: #{tpu_custom_call.1} parent=1 // pred_fallthru
      _
    // Predicated region
    $region10: #{tpu_custom_call.1} parent=1 // pred_check
      _
    $region11: #{tpu_custom_call.1} parent=1 // pred_check_branch
      %35 = sbr.rel (0) target = $region13
    $region12: #{tpu_custom_call.1} parent=1 // pred_region
      %36 = dma.done [#allocation3], 128
    $region13: #{tpu_custom_call.1} parent=1 // pred_fallthru
      _
    // Predicated region
    $region14: #{tpu_custom_call.1} parent=1 // pred_check
      _
    $region15: #{tpu_custom_call.1} parent=1 // pred_check_branch
      %38 = sbr.rel (0) target = $region17
    $region16: #{tpu_custom_call.1} parent=1 // pred_region
      %39 = dma.done [#allocation6], 2560
    $region17: #{tpu_custom_call.1} parent=1 // pred_fallthru
      _
    %v41 = vld [vmem:[#allocation2] sm:$0xff]
    %v42 = vpack.c.bf16 %v41, %v41
    %v43 = vld [vmem:[#allocation5] sm:$0xf]
    %v44 = vld [vmem:[#allocation5 + $0x4] sm:$0xf]
    %v45 = vld [vmem:[#allocation5 + $0x8] sm:$0x1]
    %v46 = vunpack.c.l.bf16 %v45
    %v47 = vld [vmem:[#allocation5 + $0x10] sm:$0xf]
    %v48 = vld [vmem:[#allocation5 + $0x14] sm:$0xf]
    %v49 = vld [vmem:[#allocation5 + $0x18] sm:$0xf]
    %v50 = vld [vmem:[#allocation5 + $0x1c] sm:$0xf]
    %v51 = vld [vmem:[#allocation5 + $0x20] sm:$0xf]
    %v52 = vld [vmem:[#allocation5 + $0x24] sm:$0xf]
    %v53 = vld [vmem:[#allocation5 + $0x28] sm:$0xf]
    %v54 = vld [vmem:[#allocation5 + $0x2c] sm:$0xf]
    %v55 = vld [vmem:[#allocation5 + $0x30] sm:$0xf]
    %v56 = vld [vmem:[#allocation5 + $0x34] sm:$0xf]
    %v57 = vld [vmem:[#allocation5 + $0x38] sm:$0xf]
    %v58 = vld [vmem:[#allocation5 + $0x3c] sm:$0xf]
    %v59 = vld [vmem:[#allocation5 + $0x40] sm:$0xf]
    %v60 = vld [vmem:[#allocation5 + $0x44] sm:$0xf]
    %v61 = vld [vmem:[#allocation5 + $0x48] sm:$0xf]
    %v62 = vld [vmem:[#allocation5 + $0x4c] sm:$0xf]
    %v63 = vld [vmem:[#allocation5 + $0x50] sm:$0x1]
    %v64 = vunpack.c.l.bf16 %v63
    %v65 = vld [vmem:[#allocation5 + $0x58] sm:$0xf]
    %v66 = vld [vmem:[#allocation5 + $0x5c] sm:$0xf]
    %v67 = vld [vmem:[#allocation5 + $0x60] sm:$0xf]
    %v68 = vld [vmem:[#allocation5 + $0x64] sm:$0xf]
    %v69 = vld [vmem:[#allocation5 + $0x68] sm:$0xf]
    %v70 = vld [vmem:[#allocation5 + $0x6c] sm:$0xf]
    %v71 = vld [vmem:[#allocation5 + $0x70] sm:$0xf]
    %v72 = vld [vmem:[#allocation5 + $0x74] sm:$0xf]
    %v73 = vld [vmem:[#allocation5 + $0x78] sm:$0xf]
    %v74 = vld [vmem:[#allocation5 + $0x7c] sm:$0xf]
    %v75 = vld [vmem:[#allocation5 + $0x80] sm:$0xf]
    %v76 = vld [vmem:[#allocation5 + $0x84] sm:$0xf]
    %v77 = vld [vmem:[#allocation5 + $0x88] sm:$0xf]
    %v78 = vld [vmem:[#allocation5 + $0x8c] sm:$0xf]
    %v79 = vld [vmem:[#allocation5 + $0x90] sm:$0xf]
    %v80 = vld [vmem:[#allocation5 + $0x94] sm:$0xf]
    %v81 = vld [vmem:[#allocation5 + $0x98] sm:$0x1]
    %v82 = vunpack.c.l.bf16 %v81
    %v83 = vlaneseq
    %v84 = vshrl.u32 %v83, 7
    %v85 = vsub.s32 0, %v84
    %v86 = vrot.slane %v46, %v85
    %v89 = vunpack.c.l.b16 %v43
    %v90 = vunpack.c.l.b16 %v44
    %v91 = vpack.c.b16 %v90, %v89
    %vm93 = vcmask 130048
    %v95 = vsel %vm93, %v42, 0
    %97 = vmatprep.subr.bf16.mxu0 0
    %98 = vmatpush1.bf16.msra.mxu0 0
    %99 = vmatprep.subr.bf16.mxu0 0
    %100 = vmatpush1.bf16.msra.mxu0 0
    %101 = vmatprep.subr.bf16.mxu0 0
    %102 = vmatpush1.bf16.msra.mxu0 0
    %103 = vmatprep.subr.bf16.mxu0 0
    %104 = vmatpush1.bf16.msra.mxu0 0
    %105 = vmatprep.subr.bf16.mxu0 0
    %106 = vmatpush1.bf16.msra.mxu0 0
    %107 = vmatprep.subr.bf16.mxu0 0
    %108 = vmatpush1.bf16.msra.mxu0 0
    %109 = vmatprep.subr.bf16.mxu0 0
    %110 = vmatpush1.bf16.msra.mxu0 0
    %111 = vmatprep.subr.bf16.mxu0 0
    %112 = vmatpush1.bf16.msra.mxu0 %v91
    %113 = vmatprep.subr.bf16.mxu0 0
    %114 = vmatpush2.bf16.msra.mxu0 0
    %115 = vmatprep.subr.bf16.mxu0 0
    %116 = vmatpush2.bf16.msra.mxu0 0
    %117 = vmatprep.subr.bf16.mxu0 0
    %118 = vmatpush2.bf16.msra.mxu0 0
    %119 = vmatprep.subr.bf16.mxu0 0
    %120 = vmatpush2.bf16.msra.mxu0 0
    %121 = vmatprep.subr.bf16.mxu0 0
    %122 = vmatpush2.bf16.msra.mxu0 0
    %123 = vmatprep.subr.bf16.mxu0 0
    %124 = vmatpush2.bf16.msra.mxu0 0
    %125 = vmatprep.subr.bf16.mxu0 0
    %126 = vmatpush2.bf16.msra.mxu0 0
    %127 = vmatprep.subr.bf16.mxu0 0
    %128 = vmatpush2.bf16.msra.mxu0 0
    %129 = vmatprep.mubr.bf16.mxu0 0
    %130 = vmatmul.mubr.bf16.gmra.mxu0 %v95
    %v131 = vpop.f32.mrf.mxu0
    %v132 = vadd.f32 %v86, %v131
    %v133 = vpop.f32.mrf.mxu0
    %v134 = vpop.f32.mrf.mxu0
    %v135 = vpop.f32.mrf.mxu0
    %136 = vdwg.mxu0
    %v137 = vmax.f32 %v132, 0.0
    %v138 = vpack.c.bf16 %v137, %v137
    %v139 = vlaneseq
    %v140 = vshrl.u32 %v139, 7
    %v141 = vsub.s32 0, %v140
    %v142 = vrot.slane %v64, %v141
    %v159 = vunpack.c.l.b16 %v47
    %v160 = vunpack.c.l.b16 %v48
    %v161 = vunpack.c.l.b16 %v49
    %v162 = vunpack.c.l.b16 %v50
    %v163 = vunpack.c.l.b16 %v51
    %v164 = vunpack.c.l.b16 %v52
    %v165 = vunpack.c.l.b16 %v53
    %v166 = vunpack.c.l.b16 %v54
    %v167 = vunpack.c.l.b16 %v55
    %v168 = vunpack.c.l.b16 %v56
    %v169 = vunpack.c.l.b16 %v57
    %v170 = vunpack.c.l.b16 %v58
    %v171 = vunpack.c.l.b16 %v59
    %v172 = vunpack.c.l.b16 %v60
    %v173 = vunpack.c.l.b16 %v61
    %v174 = vunpack.c.l.b16 %v62
    %v175 = vpack.c.b16 %v160, %v159
    %v176 = vpack.c.b16 %v162, %v161
    %v177 = vpack.c.b16 %v164, %v163
    %v178 = vpack.c.b16 %v166, %v165
    %v179 = vpack.c.b16 %v168, %v167
    %v180 = vpack.c.b16 %v170, %v169
    %v181 = vpack.c.b16 %v172, %v171
    %v182 = vpack.c.b16 %v174, %v173
    %191 = vmatprep.subr.bf16.mxu0 0
    %192 = vmatpush1.bf16.msra.mxu0 %v182
    %193 = vmatprep.subr.bf16.mxu0 0
    %194 = vmatpush1.bf16.msra.mxu0 %v181
    %195 = vmatprep.subr.bf16.mxu0 0
    %196 = vmatpush1.bf16.msra.mxu0 %v180
    %197 = vmatprep.subr.bf16.mxu0 0
    %198 = vmatpush1.bf16.msra.mxu0 %v179
    %199 = vmatprep.subr.bf16.mxu0 0
    %200 = vmatpush1.bf16.msra.mxu0 %v178
    %201 = vmatprep.subr.bf16.mxu0 0
    %202 = vmatpush1.bf16.msra.mxu0 %v177
    %203 = vmatprep.subr.bf16.mxu0 0
    %204 = vmatpush1.bf16.msra.mxu0 %v176
    %205 = vmatprep.subr.bf16.mxu0 0
    %206 = vmatpush1.bf16.msra.mxu0 %v175
    %207 = vmatprep.subr.bf16.mxu0 0
    %208 = vmatpush2.bf16.msra.mxu0 0
    %209 = vmatprep.subr.bf16.mxu0 0
    %210 = vmatpush2.bf16.msra.mxu0 0
    %211 = vmatprep.subr.bf16.mxu0 0
    %212 = vmatpush2.bf16.msra.mxu0 0
    %213 = vmatprep.subr.bf16.mxu0 0
    %214 = vmatpush2.bf16.msra.mxu0 0
    %215 = vmatprep.subr.bf16.mxu0 0
    %216 = vmatpush2.bf16.msra.mxu0 0
    %217 = vmatprep.subr.bf16.mxu0 0
    %218 = vmatpush2.bf16.msra.mxu0 0
    %219 = vmatprep.subr.bf16.mxu0 0
    %220 = vmatpush2.bf16.msra.mxu0 0
    %221 = vmatprep.subr.bf16.mxu0 0
    %222 = vmatpush2.bf16.msra.mxu0 0
    %223 = vmatprep.mubr.bf16.mxu0 0
    %224 = vmatmul.mubr.bf16.gmra.mxu0 %v138
    %v225 = vpop.f32.mrf.mxu0
    %v226 = vadd.f32 %v142, %v225
    %v227 = vpop.f32.mrf.mxu0
    %v228 = vpop.f32.mrf.mxu0
    %v229 = vpop.f32.mrf.mxu0
    %230 = vdwg.mxu0
    %v231 = vmax.f32 %v226, 0.0
    %v232 = vpack.c.bf16 %v231, %v231
    %v233 = vlaneseq
    %v234 = vshrl.u32 %v233, 7
    %v235 = vsub.s32 0, %v234
    %v236 = vrot.slane %v82, %v235
    %v253 = vunpack.c.l.b16 %v65
    %v254 = vunpack.c.l.b16 %v66
    %v255 = vunpack.c.l.b16 %v67
    %v256 = vunpack.c.l.b16 %v68
    %v257 = vunpack.c.l.b16 %v69
    %v258 = vunpack.c.l.b16 %v70
    %v259 = vunpack.c.l.b16 %v71
    %v260 = vunpack.c.l.b16 %v72
    %v261 = vunpack.c.l.b16 %v73
    %v262 = vunpack.c.l.b16 %v74
    %v263 = vunpack.c.l.b16 %v75
    %v264 = vunpack.c.l.b16 %v76
    %v265 = vunpack.c.l.b16 %v77
    %v266 = vunpack.c.l.b16 %v78
    %v267 = vunpack.c.l.b16 %v79
    %v268 = vunpack.c.l.b16 %v80
    %v269 = vpack.c.b16 %v254, %v253
    %v270 = vpack.c.b16 %v256, %v255
    %v271 = vpack.c.b16 %v258, %v257
    %v272 = vpack.c.b16 %v260, %v259
    %v273 = vpack.c.b16 %v262, %v261
    %v274 = vpack.c.b16 %v264, %v263
    %v275 = vpack.c.b16 %v266, %v265
    %v276 = vpack.c.b16 %v268, %v267
    %285 = vmatprep.subr.bf16.mxu0 0
    %286 = vmatpush1.bf16.msra.mxu0 %v276
    %287 = vmatprep.subr.bf16.mxu0 0
    %288 = vmatpush1.bf16.msra.mxu0 %v275
    %289 = vmatprep.subr.bf16.mxu0 0
    %290 = vmatpush1.bf16.msra.mxu0 %v274
    %291 = vmatprep.subr.bf16.mxu0 0
    %292 = vmatpush1.bf16.msra.mxu0 %v273
    %293 = vmatprep.subr.bf16.mxu0 0
    %294 = vmatpush1.bf16.msra.mxu0 %v272
    %295 = vmatprep.subr.bf16.mxu0 0
    %296 = vmatpush1.bf16.msra.mxu0 %v271
    %297 = vmatprep.subr.bf16.mxu0 0
    %298 = vmatpush1.bf16.msra.mxu0 %v270
    %299 = vmatprep.subr.bf16.mxu0 0
    %300 = vmatpush1.bf16.msra.mxu0 %v269
    %301 = vmatprep.subr.bf16.mxu0 0
    %302 = vmatpush2.bf16.msra.mxu0 0
    %303 = vmatprep.subr.bf16.mxu0 0
    %304 = vmatpush2.bf16.msra.mxu0 0
    %305 = vmatprep.subr.bf16.mxu0 0
    %306 = vmatpush2.bf16.msra.mxu0 0
    %307 = vmatprep.subr.bf16.mxu0 0
    %308 = vmatpush2.bf16.msra.mxu0 0
    %309 = vmatprep.subr.bf16.mxu0 0
    %310 = vmatpush2.bf16.msra.mxu0 0
    %311 = vmatprep.subr.bf16.mxu0 0
    %312 = vmatpush2.bf16.msra.mxu0 0
    %313 = vmatprep.subr.bf16.mxu0 0
    %314 = vmatpush2.bf16.msra.mxu0 0
    %315 = vmatprep.subr.bf16.mxu0 0
    %316 = vmatpush2.bf16.msra.mxu0 0
    %317 = vmatprep.mubr.bf16.mxu0 0
    %318 = vmatmul.mubr.bf16.gmra.mxu0 %v232
    %v319 = vpop.f32.mrf.mxu0
    %v320 = vadd.f32 %v236, %v319
    %v321 = vpop.f32.mrf.mxu0
    %v322 = vpop.f32.mrf.mxu0
    %v323 = vpop.f32.mrf.mxu0
    %324 = vdwg.mxu0
    %325 = vst [vmem:[#allocation7] sm:$0xff] %v320
    %v326 = vlaneseq
    %v327 = vand.u32 %v326, 127
    %vm328 = vcmp.lt.s32.totalorder %v327, 4
    %v329 = vsel %vm328, %v320, -inf
    %330 = vmax.xlane.f32.xlu0 %v329
    %v331 = vpop.xlane.xlu0 %330
    %vm332 = vcmp.ge.f32.partialorder %v329, %v331
    %vm333 = vmand %vm328, %vm332
    %v334 = vsel %vm333, %v327, 128
    %v335 = vand.u32 %v334, 65535
    %v336 = vshra.s32 %v334, 16
    %v337 = vcvt.s32.f32 %v335
    %v338 = vcvt.s32.f32 %v336
    %339 = vmin.xlane.f32.xlu0 %v338
    %v340 = vpop.xlane.xlu0 %339
    %vm341 = vcmp.eq.f32.partialorder %v338, %v340
    %v342 = vsel %vm341, %v337, inf
    %343 = vmin.xlane.f32.xlu0 %v342
    %v344 = vpop.xlane.xlu0 %343
    %v345 = vcvt.f32.s32 %v344
    %v346 = vcvt.f32.s32 %v340
    %v347 = vshll.u32 %v346, 16
    %v348 = vadd.s32 %v347, %v345
    %vm349 = vcmask 7168
    %350 = vst.msk [vmem:[%s3] sm:$0xff] %vm349, %v348
    // Predicated region
    $region18: #{tpu_custom_call.1} parent=1 // pred_check
      _
    $region19: #{tpu_custom_call.1} parent=1 // pred_check_branch
      %352 = sbr.rel (0) target = $region21
    $region20: #{tpu_custom_call.1} parent=1 // pred_region
      %s354 = ssub.s32 128, 128
      %355 = vsyncadd [#allocation4], %s354
      %s357 = sshll.u32 [#allocation7], 4
      %s358 = int_to_ptr.vmem [resolvable:$true] %s357
      %360 = dma.vmem_to_hbm [thread:$0]  %s358, 128, %s2, [#allocation4]
    $region21: #{tpu_custom_call.1} parent=1 // pred_fallthru
      _
    // Predicated region
    $region22: #{tpu_custom_call.1} parent=1 // pred_check
      _
    $region23: #{tpu_custom_call.1} parent=1 // pred_check_branch
      %362 = sbr.rel (0) target = $region25
    $region24: #{tpu_custom_call.1} parent=1 // pred_region
      _
    $region25: #{tpu_custom_call.1} parent=1 // pred_fallthru
      _
    // Predicated region
    $region26: #{tpu_custom_call.1} parent=1 // pred_check
      _
    $region27: #{tpu_custom_call.1} parent=1 // pred_check_branch
      %364 = sbr.rel (0) target = $region29
    $region28: #{tpu_custom_call.1} parent=1 // pred_region
      %365 = dma.done [#allocation4], 128
    $region29: #{tpu_custom_call.1} parent=1 // pred_fallthru
      _
    // Predicated region
    $region30: #{tpu_custom_call.1} parent=1 // pred_check
      _
    $region31: #{tpu_custom_call.1} parent=1 // pred_check_branch
      %367 = sbr.rel (0) target = $region33
    $region32: #{tpu_custom_call.1} parent=1 // pred_region
      _
    $region33: #{tpu_custom_call.1} parent=1 // pred_fallthru
      _
    %368 = vsyncpa [#allocation3], 1
    %369 = vsyncpa [#allocation6], 1
    %370 = vsyncpa [#allocation4], 1

</llo_original>
